<compile_context>
chip_gen: v7x
topology: tpu7x:2x2x1
jax: 0.10.0
libtpu: 0.0.40
codegen_flags: <defaults>
</compile_context>

<pallas_src>
import jax
import jax.numpy as jnp
from jax import lax
from jax.experimental import pallas as pl
from jax.experimental.pallas import tpu as pltpu


_STATIC_UNROLL_MAX = 16  # fully unroll the recurrence up to this many fused steps


def _vmem_budget_bytes():
    """~Half of physical VMEM, clamped to [16 MiB, 64 MiB] (v5e/v6e ~64, v7x ~32)."""
    cap = 128 * 1024 * 1024
    try:
        info = pltpu.get_tpu_info()
        cap = int(getattr(info, "vmem_capacity_bytes", cap)) or cap
    except Exception:
        pass
    return max(16 * 1024 * 1024, min(cap // 2, 64 * 1024 * 1024))


def _has_two_tensorcores():
    """True on chips where a 'parallel' grid axis can shard across 2 TensorCores."""
    try:
        kind = jax.devices()[0].device_kind.lower()
    except Exception:
        return False
    return any(tag in kind for tag in ("v7", "v4", "v5p"))


def _make_rnn_kernel(t_block):
    static_unroll = t_block <= _STATIC_UNROLL_MAX

    def rnn_kernel(x_ref, wih_ref, whh_ref, b_ref, y_ref, xp_ref, h_ref):
        s = pl.program_id(1)  # sequential time-block axis

        @pl.when(s == 0)
        def _init():
            h_ref[...] = jnp.zeros_like(h_ref)

        tb, bt, isz = x_ref.shape

        # ---- Hoisted, time-parallel input projection for the whole block ----
        # One (t_block*batch, input) @ (input, hidden) MXU matmul + fused bias,
        # parked in VMEM scratch (off the recurrent critical chain; bounds vreg
        # pressure for big blocks).  The reshape merges only the leading dims,
        # the lane (minor) dim is untouched -> free re-view, no relayout.
        x_blk = x_ref[...].reshape(tb * bt, isz)
        xp_ref[...] = (
            jnp.dot(x_blk, wih_ref[...], preferred_element_type=jnp.float32)
            + b_ref[...].astype(jnp.float32))

        whh = whh_ref[...]

        def step(t, h):
            row = t * bt if isinstance(t, int) else pl.multiple_of(t * bt, bt)
            xp_t = xp_ref[pl.ds(row, bt), :]
            h = jnp.tanh(xp_t + jnp.dot(h.astype(whh.dtype), whh,
                                        preferred_element_type=jnp.float32))
            # TODO(synk): hidden < 128 makes this a lane-masked store; a
            # lane-dense (batch*hidden)-minor y layout needs a per-step
            # sublane->lane relayout, skipped here to keep lowering robust.
            y_ref[t] = h.astype(y_ref.dtype)
            return h

        if static_unroll:
            h = h_ref[...]
            for t in range(t_block):
                h = step(t, h)
        else:
            # Rolled loop for large fused blocks: bounds code size and vreg
            # live ranges; the dot+tanh chain dominates per-step cost anyway.
            h = lax.fori_loop(0, t_block, step, h_ref[...])
        h_ref[...] = h

    return rnn_kernel


def rnn_forward(x, wih_t, whh_t, bias, *, t_block=None, batch_tile=None,
                mxu_dtype=jnp.float32):
    """x: (seq, batch, input). Returns (y.reshape(-1, hidden), h_last).

    wih_t: (input, hidden) = W_ih^T, whh_t: (hidden, hidden) = W_hh^T,
    bias: (1, hidden) = b_ih + b_hh.  mxu_dtype=jnp.bfloat16 halves weight / x
    HBM+VMEM residency on v6e/v7x; state, bias add and tanh stay float32.
    """
    seq_len, batch, input_size = x.shape
    hidden = whh_t.shape[1]
    out_dtype = x.dtype

    # Cast MXU inputs only (accumulation stays f32 via preferred_element_type).
    x = x.astype(mxu_dtype)
    wih_t = wih_t.astype(mxu_dtype)
    whh_t = whh_t.astype(mxu_dtype)
    bias = bias.astype(jnp.float32)

    # ---- pad batch to full sublanes; padded rows are independent garbage and
    # are sliced off below. ----
    pad_b = (-batch) % 8
    bp = batch + pad_b
    if pad_b:
        x = jnp.pad(x, ((0, 0), (0, pad_b), (0, 0)))

    # ---- batch tile: split independent batch recurrences across the two
    # TensorCores of megacore/v7x parts; single tile on 1-TC chips where extra
    # tiles only add per-grid-step overhead. ----
    if batch_tile is None:
        if bp >= 16 and bp % 16 == 0 and _has_two_tensorcores():
            batch_tile = bp // 2
        else:
            batch_tile = bp
    else:
        batch_tile = max(8, ((int(batch_tile) + 7) // 8) * 8)  # multiple of 8
        if batch_tile > bp or bp % batch_tile != 0:
            batch_tile = bp  # must divide the padded batch
    n_b = bp // batch_tile

    # ---- time block sized from a VMEM budget: amortizes the ~0.35us
    # per-grid-step overhead for long sequences without OOMing scoped VMEM. ----
    budget = _vmem_budget_bytes()
    w_bytes = jnp.dtype(mxu_dtype).itemsize
    fixed = (2 * (input_size * hidden + hidden * hidden) * w_bytes  # weights (2 bufs)
             + 2 * hidden * 4                                       # fused bias
             + batch_tile * hidden * 4                              # h scratch
             + (1 << 20))                                           # compiler slack
    per_t = batch_tile * (
        2 * input_size * jnp.dtype(mxu_dtype).itemsize   # x block (double-buffered)
        + 2 * hidden * jnp.dtype(out_dtype).itemsize     # y block (double-buffered)
        + hidden * 4)                                    # xp scratch
    cap = max(1, (budget - fixed) // per_t)
    if t_block is None:
        t_block = int(min(seq_len, cap))
    t_block = max(1, int(t_block))

    # ---- pad seq to a multiple of t_block (handles prime/odd lengths);
    # padded timesteps only produce garbage y rows that are sliced off. ----
    pad_s = (-seq_len) % t_block
    sp = seq_len + pad_s
    if pad_s:
        x = jnp.pad(x, ((0, pad_s), (0, 0), (0, 0)))
    n_s = sp // t_block

    y = pl.pallas_call(
        _make_rnn_kernel(t_block),
        out_shape=jax.ShapeDtypeStruct((sp, bp, hidden), out_dtype),
        grid_spec=pltpu.PrefetchScalarGridSpec(
            num_scalar_prefetch=0,
            grid=(n_b, n_s),
            in_specs=[
                pl.BlockSpec((t_block, batch_tile, input_size),
                             lambda b, s: (s, b, 0)),
                # Constant-index weight/bias blocks: the pipeline keeps them
                # resident across grid steps (no re-DMA).
                # TODO(synk): at large hidden, single-buffer these
                # (pipeline_mode=pl.Buffered(1)) to halve weight VMEM residency.
                pl.BlockSpec((input_size, hidden), lambda b, s: (0, 0)),
                pl.BlockSpec((hidden, hidden), lambda b, s: (0, 0)),
                pl.BlockSpec((1, hidden), lambda b, s: (0, 0)),
            ],
            out_specs=pl.BlockSpec((t_block, batch_tile, hidden),
                                   lambda b, s: (s, b, 0)),
            scratch_shapes=[
                pltpu.VMEM((t_block * batch_tile, hidden), jnp.float32),  # xp
                pltpu.VMEM((batch_tile, hidden), jnp.float32),            # h
            ],
        ),
        compiler_params=pltpu.CompilerParams(
            # batch tiles independent -> parallel (sharded on 2-TC parts);
            # time-block axis carries the recurrence -> arbitrary.
            dimension_semantics=("parallel", "arbitrary"),
            vmem_limit_bytes=int(budget),
        ),
    )(x, wih_t, whh_t, bias)

    # For a 1-layer RNN, h_last == y at the last *real* timestep, so neither
    # batch nor sequence padding can pollute the returned state.
    h_last = y[seq_len - 1, :batch, :]
    y = y[:seq_len, :batch, :]
    # Module.forward returns (y.reshape(-1, hidden_size), test[-1]).
    return y.reshape(-1, hidden), h_last


class PallasRNNModule:
    """JAX/Pallas equivalent of the PyTorch Module (nn.RNN, tanh, 1 layer)."""

    def __init__(self, input_size, hidden_size, batch_size=1, num_layer=1, key=None):
        self.input_size = input_size
        self.hidden_size = hidden_size
        self.batch_size = batch_size
        self.num_layer = 1
        if key is None:
            key = jax.random.PRNGKey(0)
        k1, k2, k3, k4 = jax.random.split(key, 4)
        bound = 1.0 / (hidden_size ** 0.5)  # PyTorch default init range
        self.w_ih = jax.random.uniform(k1, (hidden_size, input_size),
                                       jnp.float32, -bound, bound)
        self.w_hh = jax.random.uniform(k2, (hidden_size, hidden_size),
                                       jnp.float32, -bound, bound)
        self.b_ih = jax.random.uniform(k3, (hidden_size,),
                                       jnp.float32, -bound, bound)
        self.b_hh = jax.random.uniform(k4, (hidden_size,),
                                       jnp.float32, -bound, bound)
        # Pre-transpose / fuse ONCE here instead of per forward call.
        self._wih_t = jnp.asarray(self.w_ih.T)                      # (input, hidden)
        self._whh_t = jnp.asarray(self.w_hh.T)                      # (hidden, hidden)
        self._bias = (self.b_ih + self.b_hh).reshape(1, hidden_size)

    def __call__(self, x, **kwargs):
        return rnn_forward(x, self._wih_t, self._whh_t, self._bias, **kwargs)


def _reference_rnn(x, w_ih, w_hh, b_ih, b_hh):
    """Pure-JAX reference (mirrors torch.nn.RNN forward)."""
    seq_len, batch, _ = x.shape
    hidden = w_ih.shape[0]
    h = jnp.zeros((batch, hidden), jnp.float32)
    ys = []
    for t in range(seq_len):
        h = jnp.tanh(x[t] @ w_ih.T + b_ih + h @ w_hh.T + b_hh)
        ys.append(h)
    y = jnp.stack(ys, axis=0)
    return y.reshape(-1, hidden), h


if __name__ == "__main__":
    seq_len, batch, input_size, hidden_size = 8, 2, 4, 32

    key = jax.random.PRNGKey(0)
    k_x, k_p, k_x2 = jax.random.split(key, 3)
    x = jax.random.normal(k_x, (seq_len, batch, input_size), jnp.float32)

    model = PallasRNNModule(input_size, hidden_size, batch_size=batch, key=k_p)

    y_flat, h_last = model(x)
    y_flat = jax.block_until_ready(y_flat)
    h_last = jax.block_until_ready(h_last)

    # Verify against pure-JAX reference.
    y_ref, h_ref = _reference_rnn(x, model.w_ih, model.w_hh, model.b_ih, model.b_hh)
    assert y_flat.shape == (seq_len * batch, hidden_size)
    assert h_last.shape == (batch, hidden_size)
    assert jnp.allclose(y_flat, y_ref, atol=1e-5), "y mismatch"
    assert jnp.allclose(h_last, h_ref, atol=1e-5), "h mismatch"

    # Exercise the multi-block path: odd seq (padded to a multiple of t_block),
    # odd batch (padded to 8), h carried in scratch across grid steps.
    x2 = jax.random.normal(k_x2, (5, 3, input_size), jnp.float32)
    y2, h2 = model(x2, t_block=2)
    y2 = jax.block_until_ready(y2)
    h2 = jax.block_until_ready(h2)
    y2_ref, h2_ref = _reference_rnn(x2, model.w_ih, model.w_hh, model.b_ih, model.b_hh)
    assert y2.shape == (5 * 3, hidden_size)
    assert h2.shape == (3, hidden_size)
    assert jnp.allclose(y2, y2_ref, atol=1e-5), "y2 mismatch"
    assert jnp.allclose(h2, h2_ref, atol=1e-5), "h2 mismatch"

    print("KERNEL_OK")
</pallas_src>

<mosaic_0001>
module attributes {stable_mosaic.version = 11 : i64} {
  func.func @rnn_kernel(%arg0: i32, %arg1: i32, %arg2: memref<8x8x4xf32, #tpu.memory_space<vmem>>, %arg3: memref<4x32xf32, #tpu.memory_space<vmem>>, %arg4: memref<32x32xf32, #tpu.memory_space<vmem>>, %arg5: memref<1x32xf32, #tpu.memory_space<vmem>>, %arg6: memref<8x8x32xf32, #tpu.memory_space<vmem>>, %arg7: memref<64x32xf32, #tpu.memory_space<vmem>>, %arg8: memref<8x32xf32, #tpu.memory_space<vmem>>) attributes {dimension_semantics = [#tpu.dimension_semantics<parallel>, #tpu.dimension_semantics<arbitrary>], iteration_bounds = array<i64: 1, 1>, scalar_prefetch = 0 : i64, scratch_operands = 2 : i64, tpu.core_type = #tpu.core_type<tc>, window_params = [{transform_indices = @transform_0, window_bounds = array<i64: 8, 8, 4>}, {pipeline_mode = #tpu.pipeline_mode<synchronous>, transform_indices = @transform_1, window_bounds = array<i64: 4, 32>}, {pipeline_mode = #tpu.pipeline_mode<synchronous>, transform_indices = @transform_2, window_bounds = array<i64: 32, 32>}, {pipeline_mode = #tpu.pipeline_mode<synchronous>, transform_indices = @transform_3, window_bounds = array<i64: 1, 32>}, {transform_indices = @transform_4, window_bounds = array<i64: 8, 8, 32>}]} {
    %c0_i32 = arith.constant 0 : i32
    %0 = arith.cmpi eq, %arg1, %c0_i32 : i32
    %1 = arith.extui %0 : i1 to i32
    %c0_i32_0 = arith.constant 0 : i32
    %2 = arith.cmpi ne, %1, %c0_i32_0 : i32
    scf.if %2 {
      %cst_49 = arith.constant 0.000000e+00 : f32
      %70 = vector.broadcast %cst_49 : f32 to vector<8x32xf32>
      %c0_50 = arith.constant 0 : index
      %c0_51 = arith.constant 0 : index
      %71 = vector.load %arg8[%c0_50, %c0_51] : memref<8x32xf32, #tpu.memory_space<vmem>>, vector<8x32xf32>
      tpu.vector_store %arg8[%c0_50, %c0_51], %70 {strides = array<i32>} : memref<8x32xf32, #tpu.memory_space<vmem>>, vector<8x32xf32>,
    } else {
    }
    %c0 = arith.constant 0 : index
    %c0_1 = arith.constant 0 : index
    %c0_2 = arith.constant 0 : index
    %3 = vector.load %arg2[%c0, %c0_1, %c0_2] : memref<8x8x4xf32, #tpu.memory_space<vmem>>, vector<8x8x4xf32>
    %4 = vector.shape_cast %3 : vector<8x8x4xf32> to vector<64x4xf32>
    %c0_3 = arith.constant 0 : index
    %c0_4 = arith.constant 0 : index
    %5 = vector.load %arg3[%c0_3, %c0_4] : memref<4x32xf32, #tpu.memory_space<vmem>>, vector<4x32xf32>
    %cst = arith.constant dense<0.000000e+00> : vector<64x32xf32>
    %6 = tpu.matmul %4, %5, %cst {dimension_numbers = #tpu.dot_dimension_numbers<[1], [0], [0], [1], [0, 0, 1, 1], [], []>} : vector<64x4xf32>, vector<4x32xf32>, vector<64x32xf32> -> vector<64x32xf32>
    %c0_5 = arith.constant 0 : index
    %c0_6 = arith.constant 0 : index
    %7 = vector.load %arg5[%c0_5, %c0_6] : memref<1x32xf32, #tpu.memory_space<vmem>>, vector<1x32xf32>
    %8 = vector.broadcast %7 : vector<1x32xf32> to vector<64x32xf32>
    %9 = arith.addf %6, %8 : vector<64x32xf32>
    %c0_7 = arith.constant 0 : index
    %c0_8 = arith.constant 0 : index
    %10 = vector.load %arg7[%c0_7, %c0_8] : memref<64x32xf32, #tpu.memory_space<vmem>>, vector<64x32xf32>
    tpu.vector_store %arg7[%c0_7, %c0_8], %9 {strides = array<i32>} : memref<64x32xf32, #tpu.memory_space<vmem>>, vector<64x32xf32>,
    %c0_9 = arith.constant 0 : index
    %c0_10 = arith.constant 0 : index
    %11 = vector.load %arg4[%c0_9, %c0_10] : memref<32x32xf32, #tpu.memory_space<vmem>>, vector<32x32xf32>
    %c0_11 = arith.constant 0 : index
    %c0_12 = arith.constant 0 : index
    %12 = vector.load %arg8[%c0_11, %c0_12] : memref<8x32xf32, #tpu.memory_space<vmem>>, vector<8x32xf32>
    %c0_13 = arith.constant 0 : index
    %c0_14 = arith.constant 0 : index
    %13 = vector.load %arg7[%c0_13, %c0_14] : memref<64x32xf32, #tpu.memory_space<vmem>>, vector<8x32xf32>
    %cst_15 = arith.constant dense<0.000000e+00> : vector<8x32xf32>
    %14 = tpu.matmul %12, %11, %cst_15 {dimension_numbers = #tpu.dot_dimension_numbers<[1], [0], [0], [1], [0, 0, 1, 1], [], []>} : vector<8x32xf32>, vector<32x32xf32>, vector<8x32xf32> -> vector<8x32xf32>
    %15 = arith.addf %13, %14 : vector<8x32xf32>
    %16 = math.tanh %15 : vector<8x32xf32>
    %c0_16 = arith.constant 0 : index
    %c0_17 = arith.constant 0 : index
    %c0_18 = arith.constant 0 : index
    %17 = vector.load %arg6[%c0_16, %c0_17, %c0_18] : memref<8x8x32xf32, #tpu.memory_space<vmem>>, vector<1x8x32xf32>
    %18 = vector.shape_cast %17 : vector<1x8x32xf32> to vector<8x32xf32>
    %19 = vector.shape_cast %16 : vector<8x32xf32> to vector<1x8x32xf32>
    tpu.vector_store %arg6[%c0_16, %c0_17, %c0_18], %19 {strides = array<i32>} : memref<8x8x32xf32, #tpu.memory_space<vmem>>, vector<1x8x32xf32>,
    %c8 = arith.constant 8 : index
    %c0_19 = arith.constant 0 : index
    %20 = vector.load %arg7[%c8, %c0_19] : memref<64x32xf32, #tpu.memory_space<vmem>>, vector<8x32xf32>
    %cst_20 = arith.constant dense<0.000000e+00> : vector<8x32xf32>
    %21 = tpu.matmul %16, %11, %cst_20 {dimension_numbers = #tpu.dot_dimension_numbers<[1], [0], [0], [1], [0, 0, 1, 1], [], []>} : vector<8x32xf32>, vector<32x32xf32>, vector<8x32xf32> -> vector<8x32xf32>
    %22 = arith.addf %20, %21 : vector<8x32xf32>
    %23 = math.tanh %22 : vector<8x32xf32>
    %c1 = arith.constant 1 : index
    %c0_21 = arith.constant 0 : index
    %c0_22 = arith.constant 0 : index
    %24 = vector.load %arg6[%c1, %c0_21, %c0_22] : memref<8x8x32xf32, #tpu.memory_space<vmem>>, vector<1x8x32xf32>
    %25 = vector.shape_cast %24 : vector<1x8x32xf32> to vector<8x32xf32>
    %26 = vector.shape_cast %23 : vector<8x32xf32> to vector<1x8x32xf32>
    tpu.vector_store %arg6[%c1, %c0_21, %c0_22], %26 {strides = array<i32>} : memref<8x8x32xf32, #tpu.memory_space<vmem>>, vector<1x8x32xf32>,
    %c16 = arith.constant 16 : index
    %c0_23 = arith.constant 0 : index
    %27 = vector.load %arg7[%c16, %c0_23] : memref<64x32xf32, #tpu.memory_space<vmem>>, vector<8x32xf32>
    %cst_24 = arith.constant dense<0.000000e+00> : vector<8x32xf32>
    %28 = tpu.matmul %23, %11, %cst_24 {dimension_numbers = #tpu.dot_dimension_numbers<[1], [0], [0], [1], [0, 0, 1, 1], [], []>} : vector<8x32xf32>, vector<32x32xf32>, vector<8x32xf32> -> vector<8x32xf32>
    %29 = arith.addf %27, %28 : vector<8x32xf32>
    %30 = math.tanh %29 : vector<8x32xf32>
    %c2 = arith.constant 2 : index
    %c0_25 = arith.constant 0 : index
    %c0_26 = arith.constant 0 : index
    %31 = vector.load %arg6[%c2, %c0_25, %c0_26] : memref<8x8x32xf32, #tpu.memory_space<vmem>>, vector<1x8x32xf32>
    %32 = vector.shape_cast %31 : vector<1x8x32xf32> to vector<8x32xf32>
    %33 = vector.shape_cast %30 : vector<8x32xf32> to vector<1x8x32xf32>
    tpu.vector_store %arg6[%c2, %c0_25, %c0_26], %33 {strides = array<i32>} : memref<8x8x32xf32, #tpu.memory_space<vmem>>, vector<1x8x32xf32>,
    %c24 = arith.constant 24 : index
    %c0_27 = arith.constant 0 : index
    %34 = vector.load %arg7[%c24, %c0_27] : memref<64x32xf32, #tpu.memory_space<vmem>>, vector<8x32xf32>
    %cst_28 = arith.constant dense<0.000000e+00> : vector<8x32xf32>
    %35 = tpu.matmul %30, %11, %cst_28 {dimension_numbers = #tpu.dot_dimension_numbers<[1], [0], [0], [1], [0, 0, 1, 1], [], []>} : vector<8x32xf32>, vector<32x32xf32>, vector<8x32xf32> -> vector<8x32xf32>
    %36 = arith.addf %34, %35 : vector<8x32xf32>
    %37 = math.tanh %36 : vector<8x32xf32>
    %c3 = arith.constant 3 : index
    %c0_29 = arith.constant 0 : index
    %c0_30 = arith.constant 0 : index
    %38 = vector.load %arg6[%c3, %c0_29, %c0_30] : memref<8x8x32xf32, #tpu.memory_space<vmem>>, vector<1x8x32xf32>
    %39 = vector.shape_cast %38 : vector<1x8x32xf32> to vector<8x32xf32>
    %40 = vector.shape_cast %37 : vector<8x32xf32> to vector<1x8x32xf32>
    tpu.vector_store %arg6[%c3, %c0_29, %c0_30], %40 {strides = array<i32>} : memref<8x8x32xf32, #tpu.memory_space<vmem>>, vector<1x8x32xf32>,
    %c32 = arith.constant 32 : index
    %c0_31 = arith.constant 0 : index
    %41 = vector.load %arg7[%c32, %c0_31] : memref<64x32xf32, #tpu.memory_space<vmem>>, vector<8x32xf32>
    %cst_32 = arith.constant dense<0.000000e+00> : vector<8x32xf32>
    %42 = tpu.matmul %37, %11, %cst_32 {dimension_numbers = #tpu.dot_dimension_numbers<[1], [0], [0], [1], [0, 0, 1, 1], [], []>} : vector<8x32xf32>, vector<32x32xf32>, vector<8x32xf32> -> vector<8x32xf32>
    %43 = arith.addf %41, %42 : vector<8x32xf32>
    %44 = math.tanh %43 : vector<8x32xf32>
    %c4 = arith.constant 4 : index
    %c0_33 = arith.constant 0 : index
    %c0_34 = arith.constant 0 : index
    %45 = vector.load %arg6[%c4, %c0_33, %c0_34] : memref<8x8x32xf32, #tpu.memory_space<vmem>>, vector<1x8x32xf32>
    %46 = vector.shape_cast %45 : vector<1x8x32xf32> to vector<8x32xf32>
    %47 = vector.shape_cast %44 : vector<8x32xf32> to vector<1x8x32xf32>
    tpu.vector_store %arg6[%c4, %c0_33, %c0_34], %47 {strides = array<i32>} : memref<8x8x32xf32, #tpu.memory_space<vmem>>, vector<1x8x32xf32>,
    %c40 = arith.constant 40 : index
    %c0_35 = arith.constant 0 : index
    %48 = vector.load %arg7[%c40, %c0_35] : memref<64x32xf32, #tpu.memory_space<vmem>>, vector<8x32xf32>
    %cst_36 = arith.constant dense<0.000000e+00> : vector<8x32xf32>
    %49 = tpu.matmul %44, %11, %cst_36 {dimension_numbers = #tpu.dot_dimension_numbers<[1], [0], [0], [1], [0, 0, 1, 1], [], []>} : vector<8x32xf32>, vector<32x32xf32>, vector<8x32xf32> -> vector<8x32xf32>
    %50 = arith.addf %48, %49 : vector<8x32xf32>
    %51 = math.tanh %50 : vector<8x32xf32>
    %c5 = arith.constant 5 : index
    %c0_37 = arith.constant 0 : index
    %c0_38 = arith.constant 0 : index
    %52 = vector.load %arg6[%c5, %c0_37, %c0_38] : memref<8x8x32xf32, #tpu.memory_space<vmem>>, vector<1x8x32xf32>
    %53 = vector.shape_cast %52 : vector<1x8x32xf32> to vector<8x32xf32>
    %54 = vector.shape_cast %51 : vector<8x32xf32> to vector<1x8x32xf32>
    tpu.vector_store %arg6[%c5, %c0_37, %c0_38], %54 {strides = array<i32>} : memref<8x8x32xf32, #tpu.memory_space<vmem>>, vector<1x8x32xf32>,
    %c48 = arith.constant 48 : index
    %c0_39 = arith.constant 0 : index
    %55 = vector.load %arg7[%c48, %c0_39] : memref<64x32xf32, #tpu.memory_space<vmem>>, vector<8x32xf32>
    %cst_40 = arith.constant dense<0.000000e+00> : vector<8x32xf32>
    %56 = tpu.matmul %51, %11, %cst_40 {dimension_numbers = #tpu.dot_dimension_numbers<[1], [0], [0], [1], [0, 0, 1, 1], [], []>} : vector<8x32xf32>, vector<32x32xf32>, vector<8x32xf32> -> vector<8x32xf32>
    %57 = arith.addf %55, %56 : vector<8x32xf32>
    %58 = math.tanh %57 : vector<8x32xf32>
    %c6 = arith.constant 6 : index
    %c0_41 = arith.constant 0 : index
    %c0_42 = arith.constant 0 : index
    %59 = vector.load %arg6[%c6, %c0_41, %c0_42] : memref<8x8x32xf32, #tpu.memory_space<vmem>>, vector<1x8x32xf32>
    %60 = vector.shape_cast %59 : vector<1x8x32xf32> to vector<8x32xf32>
    %61 = vector.shape_cast %58 : vector<8x32xf32> to vector<1x8x32xf32>
    tpu.vector_store %arg6[%c6, %c0_41, %c0_42], %61 {strides = array<i32>} : memref<8x8x32xf32, #tpu.memory_space<vmem>>, vector<1x8x32xf32>,
    %c56 = arith.constant 56 : index
    %c0_43 = arith.constant 0 : index
    %62 = vector.load %arg7[%c56, %c0_43] : memref<64x32xf32, #tpu.memory_space<vmem>>, vector<8x32xf32>
    %cst_44 = arith.constant dense<0.000000e+00> : vector<8x32xf32>
    %63 = tpu.matmul %58, %11, %cst_44 {dimension_numbers = #tpu.dot_dimension_numbers<[1], [0], [0], [1], [0, 0, 1, 1], [], []>} : vector<8x32xf32>, vector<32x32xf32>, vector<8x32xf32> -> vector<8x32xf32>
    %64 = arith.addf %62, %63 : vector<8x32xf32>
    %65 = math.tanh %64 : vector<8x32xf32>
    %c7 = arith.constant 7 : index
    %c0_45 = arith.constant 0 : index
    %c0_46 = arith.constant 0 : index
    %66 = vector.load %arg6[%c7, %c0_45, %c0_46] : memref<8x8x32xf32, #tpu.memory_space<vmem>>, vector<1x8x32xf32>
    %67 = vector.shape_cast %66 : vector<1x8x32xf32> to vector<8x32xf32>
    %68 = vector.shape_cast %65 : vector<8x32xf32> to vector<1x8x32xf32>
    tpu.vector_store %arg6[%c7, %c0_45, %c0_46], %68 {strides = array<i32>} : memref<8x8x32xf32, #tpu.memory_space<vmem>>, vector<1x8x32xf32>,
    %c0_47 = arith.constant 0 : index
    %c0_48 = arith.constant 0 : index
    %69 = vector.load %arg8[%c0_47, %c0_48] : memref<8x32xf32, #tpu.memory_space<vmem>>, vector<8x32xf32>
    tpu.vector_store %arg8[%c0_47, %c0_48], %65 {strides = array<i32>} : memref<8x32xf32, #tpu.memory_space<vmem>>, vector<8x32xf32>,
    return
  }
  func.func @transform_0(%arg0: i32, %arg1: i32) -> (i32, i32, i32) {
    %c0_i32 = arith.constant 0 : i32
    %c0_i32_0 = arith.constant 0 : i32
    return %arg1, %arg0, %c0_i32 : i32, i32, i32
  }
  func.func @transform_1(%arg0: i32, %arg1: i32) -> (i32, i32) {
    %c0_i32 = arith.constant 0 : i32
    %c0_i32_0 = arith.constant 0 : i32
    %c0_i32_1 = arith.constant 0 : i32
    return %c0_i32, %c0_i32_0 : i32, i32
  }
  func.func @transform_2(%arg0: i32, %arg1: i32) -> (i32, i32) {
    %c0_i32 = arith.constant 0 : i32
    %c0_i32_0 = arith.constant 0 : i32
    %c0_i32_1 = arith.constant 0 : i32
    return %c0_i32, %c0_i32_0 : i32, i32
  }
  func.func @transform_3(%arg0: i32, %arg1: i32) -> (i32, i32) {
    %c0_i32 = arith.constant 0 : i32
    %c0_i32_0 = arith.constant 0 : i32
    %c0_i32_1 = arith.constant 0 : i32
    return %c0_i32, %c0_i32_0 : i32, i32
  }
  func.func @transform_4(%arg0: i32, %arg1: i32) -> (i32, i32, i32) {
    %c0_i32 = arith.constant 0 : i32
    %c0_i32_0 = arith.constant 0 : i32
    return %arg1, %arg0, %c0_i32 : i32, i32, i32
  }
}

</mosaic_0001>

<llo_original>
// kernel: tpu_custom_call.1
$region0: #{tpu_custom_call.1}
  #allocation0 [shape = 'u32[]', space=smem, size = 0x4, offset = 0x4, fixed_abs, tag = 'smem constant byte address 0x4 - core index']
  #allocation1 [shape = 'u32[144,128]{1,0:T(1,128)}', space=vmem, size = 0x12000, scoped, tag = 'internal scratch']
  #allocation2 [shape = 'f32[64,32]{1,0:T(8,128)}', space=vmem, size = 0x8000, scoped, tag = 'scratch operand']
  #allocation3 [shape = 'f32[8,32]{1,0:T(8,128)}', space=vmem, size = 0x1000, scoped, tag = 'scratch operand']
  %s0 = inlined_call_operand.hbm [shape: f32[8,8,4], index: 0, kind: input, shape index: {}]
  %s1 = inlined_call_operand.hbm [shape: f32[4,32], index: 1, kind: input, shape index: {}]
  %s2 = inlined_call_operand.hbm [shape: f32[32,32], index: 2, kind: input, shape index: {}]
  %s3 = inlined_call_operand.hbm [shape: f32[1,32], index: 3, kind: input, shape index: {}]
  %s4 = inlined_call_operand.hbm [shape: f32[8,8,32], index: 4, kind: output, shape index: {}]
  %s5 = sld [smem:[#allocation0]]
  $region46: #{tpu_custom_call.1} parent=0
    _
  %s7 = ssub.s32 1, %s5
  %s8 = scalar_select 0, %s7, %s5
  $region1: #{tpu_custom_call.1} parent=0
    #allocation4 [shape = 'u8[32768]{0}', space=vmem, size = 0x8000, scoped, tag = 'input window, operand 0, single buffered']
    #allocation5 [shape = 's32[1]{0}', space=sflag, size = 0x4, scoped, tag = 'scoped memory for tpu_custom_call.1']
    #allocation6 [shape = 's32[1]{0}', space=sflag, size = 0x4, scoped, tag = 'scoped memory for tpu_custom_call.1']
    #allocation7 [shape = 'u8[2048]{0}', space=vmem, size = 0x800, scoped, tag = 'input window, operand 1, single buffered']
    #allocation8 [shape = 's32[1]{0}', space=sflag, size = 0x4, scoped, tag = 'scoped memory for tpu_custom_call.1']
    #allocation9 [shape = 'u8[16384]{0}', space=vmem, size = 0x4000, scoped, tag = 'input window, operand 2, single buffered']
    #allocation10 [shape = 'u8[512]{0}', space=vmem, size = 0x400, scoped, tag = 'input window, operand 3, single buffered']
    #allocation11 [shape = 's32[1]{0}', space=sflag, size = 0x4, scoped, tag = 'scoped memory for tpu_custom_call.1']
    #allocation12 [shape = 'u8[32768]{0}', space=vmem, size = 0x8000, scoped, tag = 'output window, operand 0, single buffered']
    %9 = vsyncpa [#allocation5], 0
    %10 = vsyncpa [#allocation8], 0
    %11 = vsyncpa [#allocation11], 0
    %12 = vsyncpa [#allocation6], 0
    // Predicated region
    $region2: #{tpu_custom_call.1} parent=1 // pred_check
      _
    $region3: #{tpu_custom_call.1} parent=1 // pred_check_branch
      %14 = sbr.rel (0) target = $region5
    $region4: #{tpu_custom_call.1} parent=1 // pred_region
      %s16 = ssub.s32 1024, 1024
      %17 = vsyncadd [#allocation5], %s16
      %s18 = sshll.u32 [#allocation4], 4
      %s19 = int_to_ptr.vmem [resolvable:$true] %s18
      %24 = dma.hbm_to_vmem [thread:$0]  %s0, 1024, %s19, [#allocation5], 128, 128, 8
    $region5: #{tpu_custom_call.1} parent=1 // pred_fallthru
      _
    // Predicated region
    $region6: #{tpu_custom_call.1} parent=1 // pred_check
      _
    $region7: #{tpu_custom_call.1} parent=1 // pred_check_branch
      %26 = sbr.rel (0) target = $region9
    $region8: #{tpu_custom_call.1} parent=1 // pred_region
      %s28 = ssub.s32 64, 64
      %29 = vsyncadd [#allocation8], %s28
      %s31 = sshll.u32 [#allocation7], 4
      %s32 = int_to_ptr.vmem [resolvable:$true] %s31
      %34 = dma.hbm_to_vmem [thread:$0]  %s1, 64, %s32, [#allocation8]
    $region9: #{tpu_custom_call.1} parent=1 // pred_fallthru
      _
    // Predicated region
    $region10: #{tpu_custom_call.1} parent=1 // pred_check
      _
    $region11: #{tpu_custom_call.1} parent=1 // pred_check_branch
      %36 = sbr.rel (0) target = $region13
    $region12: #{tpu_custom_call.1} parent=1 // pred_region
      %s38 = ssub.s32 512, 512
      %39 = vsyncadd [#allocation8], %s38
      %s40 = sshll.u32 [#allocation9], 4
      %s41 = int_to_ptr.vmem [resolvable:$true] %s40
      %46 = dma.hbm_to_vmem [thread:$0]  %s2, 512, %s41, [#allocation8], 128, 128, 8
    $region13: #{tpu_custom_call.1} parent=1 // pred_fallthru
      _
    // Predicated region
    $region14: #{tpu_custom_call.1} parent=1 // pred_check
      _
    $region15: #{tpu_custom_call.1} parent=1 // pred_check_branch
      %48 = sbr.rel (0) target = $region17
    $region16: #{tpu_custom_call.1} parent=1 // pred_region
      %s50 = ssub.s32 16, 16
      %51 = vsyncadd [#allocation11], %s50
      %s53 = sshll.u32 [#allocation10], 4
      %s54 = int_to_ptr.vmem [resolvable:$true] %s53
      %56 = dma.hbm_to_vmem [thread:$0]  %s3, 16, %s54, [#allocation11]
    $region17: #{tpu_custom_call.1} parent=1 // pred_fallthru
      _
    // Predicated region
    $region18: #{tpu_custom_call.1} parent=1 // pred_check
      _
    $region19: #{tpu_custom_call.1} parent=1 // pred_check_branch
      %58 = sbr.rel (0) target = $region21
    $region20: #{tpu_custom_call.1} parent=1 // pred_region
      %59 = dma.done [#allocation5], 1024
    $region21: #{tpu_custom_call.1} parent=1 // pred_fallthru
      _
    // Predicated region
    $region22: #{tpu_custom_call.1} parent=1 // pred_check
      _
    $region23: #{tpu_custom_call.1} parent=1 // pred_check_branch
      %61 = sbr.rel (0) target = $region25
    $region24: #{tpu_custom_call.1} parent=1 // pred_region
      %62 = dma.done [#allocation8], 64
    $region25: #{tpu_custom_call.1} parent=1 // pred_fallthru
      _
    // Predicated region
    $region26: #{tpu_custom_call.1} parent=1 // pred_check
      _
    $region27: #{tpu_custom_call.1} parent=1 // pred_check_branch
      %64 = sbr.rel (0) target = $region29
    $region28: #{tpu_custom_call.1} parent=1 // pred_region
      %65 = dma.done [#allocation8], 512
    $region29: #{tpu_custom_call.1} parent=1 // pred_fallthru
      _
    // Predicated region
    $region30: #{tpu_custom_call.1} parent=1 // pred_check
      _
    $region31: #{tpu_custom_call.1} parent=1 // pred_check_branch
      %67 = sbr.rel (0) target = $region33
    $region32: #{tpu_custom_call.1} parent=1 // pred_region
      %68 = dma.done [#allocation11], 16
    $region33: #{tpu_custom_call.1} parent=1 // pred_fallthru
      _
    %p69 = scmp.eq.s32.totalorder 0, 0
    // Predicated region
    $region34: #{tpu_custom_call.1} parent=1 // pred_check
      %p70 = pneg %p69
    $region35: #{tpu_custom_call.1} parent=1 // pred_check_branch
      %72 = sbr.rel (%p70) target = $region37
    $region36: #{tpu_custom_call.1} parent=1 // pred_region
      %vm73 = vcmask 261120
      %74 = vst.msk [vmem:[#allocation3] sm:$0xff] %vm73, 0.0
    $region37: #{tpu_custom_call.1} parent=1 // pred_fallthru
      _
    %v75 = vld [vmem:[#allocation4] sm:$0xff]
    %v76 = vld [vmem:[#allocation4 + $0x8] sm:$0xff]
    %v77 = vld [vmem:[#allocation4 + $0x10] sm:$0xff]
    %v78 = vld [vmem:[#allocation4 + $0x18] sm:$0xff]
    %v79 = vld [vmem:[#allocation4 + $0x20] sm:$0xff]
    %v80 = vld [vmem:[#allocation4 + $0x28] sm:$0xff]
    %v81 = vld [vmem:[#allocation4 + $0x30] sm:$0xff]
    %v82 = vld [vmem:[#allocation4 + $0x38] sm:$0xff]
    %v83 = vld [vmem:[#allocation7] sm:$0xf]
    %v84 = vld [vmem:[#allocation10] sm:$0x1]
    %v86 = vlaneseq
    %v87 = vshrl.u32 %v86, 7
    %v88 = vsub.s32 0, %v87
    %v89 = vrot.slane %v84, %v88
    %vm91 = vcmask 31744
    %v93 = vsel %vm91, %v75, 0
    %v96 = vsel %vm91, %v76, 0
    %v99 = vsel %vm91, %v77, 0
    %v102 = vsel %vm91, %v78, 0
    %v105 = vsel %vm91, %v79, 0
    %v108 = vsel %vm91, %v80, 0
    %v111 = vsel %vm91, %v81, 0
    %v114 = vsel %vm91, %v82, 0
    %vm116 = vcmask 1043456
    %v118 = vsel %vm116, %v83, 0
    %120 = vmatprep.subr.mxu0 0.0
    %121 = vmatpush1.msra.mxu0 %v118
    %122 = vmatprep.subr.mxu0 0.0
    %123 = vmatpush1.msra.mxu0 0.0
    %124 = vmatprep.subr.mxu0 0.0
    %125 = vmatpush1.msra.mxu0 0.0
    %126 = vmatprep.subr.mxu0 0.0
    %127 = vmatpush1.msra.mxu0 0.0
    %128 = vmatprep.subr.mxu0 0.0
    %129 = vmatpush1.msra.mxu0 0.0
    %130 = vmatprep.subr.mxu0 0.0
    %131 = vmatpush1.msra.mxu0 0.0
    %132 = vmatprep.subr.mxu0 0.0
    %133 = vmatpush1.msra.mxu0 0.0
    %134 = vmatprep.subr.mxu0 0.0
    %135 = vmatpush1.msra.mxu0 0.0
    %136 = vmatprep.subr.mxu0 0.0
    %137 = vmatpush1.msra.mxu0 0.0
    %138 = vmatprep.subr.mxu0 0.0
    %139 = vmatpush1.msra.mxu0 0.0
    %140 = vmatprep.subr.mxu0 0.0
    %141 = vmatpush1.msra.mxu0 0.0
    %142 = vmatprep.subr.mxu0 0.0
    %143 = vmatpush1.msra.mxu0 0.0
    %144 = vmatprep.subr.mxu0 0.0
    %145 = vmatpush1.msra.mxu0 0.0
    %146 = vmatprep.subr.mxu0 0.0
    %147 = vmatpush1.msra.mxu0 0.0
    %148 = vmatprep.subr.mxu0 0.0
    %149 = vmatpush1.msra.mxu0 0.0
    %150 = vmatprep.subr.mxu0 0.0
    %151 = vmatpush1.msra.mxu0 0.0
    %152 = vmatprep.subr.mxu0 0.0
    %153 = vmatpush1.msra.mxu0 0.0
    %154 = vmatprep.subr.mxu0 0.0
    %155 = vmatpush1.msra.mxu0 0.0
    %156 = vmatprep.subr.mxu0 0.0
    %157 = vmatpush1.msra.mxu0 0.0
    %158 = vmatprep.subr.mxu0 0.0
    %159 = vmatpush1.msra.mxu0 0.0
    %160 = vmatprep.subr.mxu0 0.0
    %161 = vmatpush1.msra.mxu0 0.0
    %162 = vmatprep.subr.mxu0 0.0
    %163 = vmatpush1.msra.mxu0 0.0
    %164 = vmatprep.subr.mxu0 0.0
    %165 = vmatpush1.msra.mxu0 0.0
    %166 = vmatprep.subr.mxu0 0.0
    %167 = vmatpush1.msra.mxu0 0.0
    %168 = vmatprep.subr.mxu0 0.0
    %169 = vmatpush1.msra.mxu0 0.0
    %170 = vmatprep.subr.mxu0 0.0
    %171 = vmatpush1.msra.mxu0 0.0
    %172 = vmatprep.subr.mxu0 0.0
    %173 = vmatpush1.msra.mxu0 0.0
    %174 = vmatprep.subr.mxu0 0.0
    %175 = vmatpush1.msra.mxu0 0.0
    %176 = vmatprep.subr.mxu0 0.0
    %177 = vmatpush1.msra.mxu0 0.0
    %178 = vmatprep.subr.mxu0 0.0
    %179 = vmatpush1.msra.mxu0 0.0
    %180 = vmatprep.subr.mxu0 0.0
    %181 = vmatpush1.msra.mxu0 0.0
    %182 = vmatprep.subr.mxu0 0.0
    %183 = vmatpush1.msra.mxu0 0.0
    %184 = vmatprep.mubr.f32.mxu0 0.0
    %185 = vmatmul.mubr.f32.gmra.mrb[0].mxu0 %v93
    %v186 = vpop.f32.mrb[0].mxu0
    %v187 = vadd.f32 %v89, %v186
    %v188 = vpop.f32.mrb[0].mxu0
    %189 = vmatprep.mubr.f32.mxu0 0.0
    %190 = vmatmul.mubr.f32.gmra.mrb[0].mxu0 %v96
    %v191 = vpop.f32.mrb[0].mxu0
    %v192 = vadd.f32 %v89, %v191
    %v193 = vpop.f32.mrb[0].mxu0
    %194 = vmatprep.mubr.f32.mxu0 0.0
    %195 = vmatmul.mubr.f32.gmra.mrb[0].mxu0 %v99
    %v196 = vpop.f32.mrb[0].mxu0
    %v197 = vadd.f32 %v89, %v196
    %v198 = vpop.f32.mrb[0].mxu0
    %199 = vmatprep.mubr.f32.mxu0 0.0
    %200 = vmatmul.mubr.f32.gmra.mrb[0].mxu0 %v102
    %v201 = vpop.f32.mrb[0].mxu0
    %v202 = vadd.f32 %v89, %v201
    %v203 = vpop.f32.mrb[0].mxu0
    %204 = vmatprep.mubr.f32.mxu0 0.0
    %205 = vmatmul.mubr.f32.gmra.mrb[0].mxu0 %v105
    %v206 = vpop.f32.mrb[0].mxu0
    %v207 = vadd.f32 %v89, %v206
    %v208 = vpop.f32.mrb[0].mxu0
    %209 = vmatprep.mubr.f32.mxu0 0.0
    %210 = vmatmul.mubr.f32.gmra.mrb[0].mxu0 %v108
    %v211 = vpop.f32.mrb[0].mxu0
    %v212 = vadd.f32 %v89, %v211
    %v213 = vpop.f32.mrb[0].mxu0
    %214 = vmatprep.mubr.f32.mxu0 0.0
    %215 = vmatmul.mubr.f32.gmra.mrb[0].mxu0 %v111
    %v216 = vpop.f32.mrb[0].mxu0
    %v217 = vadd.f32 %v89, %v216
    %v218 = vpop.f32.mrb[0].mxu0
    %219 = vmatprep.mubr.f32.mxu0 0.0
    %220 = vmatmul.mubr.f32.gmra.mrb[0].mxu0 %v114
    %v221 = vpop.f32.mrb[0].mxu0
    %v222 = vadd.f32 %v89, %v221
    %v223 = vpop.f32.mrb[0].mxu0
    %224 = vdwg.mxu0
    %vm225 = vcmask 261120
    %226 = vst.msk [vmem:[#allocation2] sm:$0xff] %vm225, %v187
    %227 = vst.msk [vmem:[#allocation2 + $0x8] sm:$0xff] %vm225, %v192
    %228 = vst.msk [vmem:[#allocation2 + $0x10] sm:$0xff] %vm225, %v197
    %229 = vst.msk [vmem:[#allocation2 + $0x18] sm:$0xff] %vm225, %v202
    %230 = vst.msk [vmem:[#allocation2 + $0x20] sm:$0xff] %vm225, %v207
    %231 = vst.msk [vmem:[#allocation2 + $0x28] sm:$0xff] %vm225, %v212
    %232 = vst.msk [vmem:[#allocation2 + $0x30] sm:$0xff] %vm225, %v217
    %233 = vst.msk [vmem:[#allocation2 + $0x38] sm:$0xff] %vm225, %v222
    %v234 = vld [vmem:[#allocation9] sm:$0xff]
    %v235 = vld [vmem:[#allocation9 + $0x8] sm:$0xff]
    %v236 = vld [vmem:[#allocation9 + $0x10] sm:$0xff]
    %v237 = vld [vmem:[#allocation9 + $0x18] sm:$0xff]
    %v238 = vld [vmem:[#allocation3] sm:$0xff]
    %v239 = vld [vmem:[#allocation2] sm:$0xff]
    %v241 = vsel %vm225, %v238, 0
    %243 = vmatprep.subr.mxu0 0.0
    %244 = vmatpush1.msra.mxu0 %v234
    %245 = vmatprep.subr.mxu0 0.0
    %246 = vmatpush1.msra.mxu0 %v235
    %247 = vmatprep.subr.mxu0 0.0
    %248 = vmatpush1.msra.mxu0 %v236
    %249 = vmatprep.subr.mxu0 0.0
    %250 = vmatpush1.msra.mxu0 %v237
    %251 = vmatprep.subr.mxu0 0.0
    %252 = vmatpush1.msra.mxu0 0.0
    %253 = vmatprep.subr.mxu0 0.0
    %254 = vmatpush1.msra.mxu0 0.0
    %255 = vmatprep.subr.mxu0 0.0
    %256 = vmatpush1.msra.mxu0 0.0
    %257 = vmatprep.subr.mxu0 0.0
    %258 = vmatpush1.msra.mxu0 0.0
    %259 = vmatprep.subr.mxu0 0.0
    %260 = vmatpush1.msra.mxu0 0.0
    %261 = vmatprep.subr.mxu0 0.0
    %262 = vmatpush1.msra.mxu0 0.0
    %263 = vmatprep.subr.mxu0 0.0
    %264 = vmatpush1.msra.mxu0 0.0
    %265 = vmatprep.subr.mxu0 0.0
    %266 = vmatpush1.msra.mxu0 0.0
    %267 = vmatprep.subr.mxu0 0.0
    %268 = vmatpush1.msra.mxu0 0.0
    %269 = vmatprep.subr.mxu0 0.0
    %270 = vmatpush1.msra.mxu0 0.0
    %271 = vmatprep.subr.mxu0 0.0
    %272 = vmatpush1.msra.mxu0 0.0
    %273 = vmatprep.subr.mxu0 0.0
    %274 = vmatpush1.msra.mxu0 0.0
    %275 = vmatprep.subr.mxu0 0.0
    %276 = vmatpush1.msra.mxu0 0.0
    %277 = vmatprep.subr.mxu0 0.0
    %278 = vmatpush1.msra.mxu0 0.0
    %279 = vmatprep.subr.mxu0 0.0
    %280 = vmatpush1.msra.mxu0 0.0
    %281 = vmatprep.subr.mxu0 0.0
    %282 = vmatpush1.msra.mxu0 0.0
    %283 = vmatprep.subr.mxu0 0.0
    %284 = vmatpush1.msra.mxu0 0.0
    %285 = vmatprep.subr.mxu0 0.0
    %286 = vmatpush1.msra.mxu0 0.0
    %287 = vmatprep.subr.mxu0 0.0
    %288 = vmatpush1.msra.mxu0 0.0
    %289 = vmatprep.subr.mxu0 0.0
    %290 = vmatpush1.msra.mxu0 0.0
    %291 = vmatprep.subr.mxu0 0.0
    %292 = vmatpush1.msra.mxu0 0.0
    %293 = vmatprep.subr.mxu0 0.0
    %294 = vmatpush1.msra.mxu0 0.0
    %295 = vmatprep.subr.mxu0 0.0
    %296 = vmatpush1.msra.mxu0 0.0
    %297 = vmatprep.subr.mxu0 0.0
    %298 = vmatpush1.msra.mxu0 0.0
    %299 = vmatprep.subr.mxu0 0.0
    %300 = vmatpush1.msra.mxu0 0.0
    %301 = vmatprep.subr.mxu0 0.0
    %302 = vmatpush1.msra.mxu0 0.0
    %303 = vmatprep.subr.mxu0 0.0
    %304 = vmatpush1.msra.mxu0 0.0
    %305 = vmatprep.subr.mxu0 0.0
    %306 = vmatpush1.msra.mxu0 0.0
    %307 = vmatprep.mubr.f32.mxu0 0.0
    %308 = vmatmul.mubr.f32.gmra.mrb[0].mxu0 %v241
    %v309 = vpop.f32.mrb[0].mxu0
    %v310 = vadd.f32 0.0, %v309
    %v311 = vpop.f32.mrb[0].mxu0
    %312 = vdwg.mxu0
    %v313 = vadd.f32 %v239, %v310
    %v314 = vtanh.pop %v313
    %315 = vst.msk [vmem:[#allocation12] sm:$0xff] %vm225, %v314
    %v316 = vld [vmem:[#allocation2 + $0x8] sm:$0xff]
    %v318 = vsel %vm225, %v314, 0
    %320 = vmatprep.subr.mxu0 0.0
    %321 = vmatpush1.msra.mxu0 %v234
    %322 = vmatprep.subr.mxu0 0.0
    %323 = vmatpush1.msra.mxu0 %v235
    %324 = vmatprep.subr.mxu0 0.0
    %325 = vmatpush1.msra.mxu0 %v236
    %326 = vmatprep.subr.mxu0 0.0
    %327 = vmatpush1.msra.mxu0 %v237
    %328 = vmatprep.subr.mxu0 0.0
    %329 = vmatpush1.msra.mxu0 0.0
    %330 = vmatprep.subr.mxu0 0.0
    %331 = vmatpush1.msra.mxu0 0.0
    %332 = vmatprep.subr.mxu0 0.0
    %333 = vmatpush1.msra.mxu0 0.0
    %334 = vmatprep.subr.mxu0 0.0
    %335 = vmatpush1.msra.mxu0 0.0
    %336 = vmatprep.subr.mxu0 0.0
    %337 = vmatpush1.msra.mxu0 0.0
    %338 = vmatprep.subr.mxu0 0.0
    %339 = vmatpush1.msra.mxu0 0.0
    %340 = vmatprep.subr.mxu0 0.0
    %341 = vmatpush1.msra.mxu0 0.0
    %342 = vmatprep.subr.mxu0 0.0
    %343 = vmatpush1.msra.mxu0 0.0
    %344 = vmatprep.subr.mxu0 0.0
    %345 = vmatpush1.msra.mxu0 0.0
    %346 = vmatprep.subr.mxu0 0.0
    %347 = vmatpush1.msra.mxu0 0.0
    %348 = vmatprep.subr.mxu0 0.0
    %349 = vmatpush1.msra.mxu0 0.0
    %350 = vmatprep.subr.mxu0 0.0
    %351 = vmatpush1.msra.mxu0 0.0
    %352 = vmatprep.subr.mxu0 0.0
    %353 = vmatpush1.msra.mxu0 0.0
    %354 = vmatprep.subr.mxu0 0.0
    %355 = vmatpush1.msra.mxu0 0.0
    %356 = vmatprep.subr.mxu0 0.0
    %357 = vmatpush1.msra.mxu0 0.0
    %358 = vmatprep.subr.mxu0 0.0
    %359 = vmatpush1.msra.mxu0 0.0
    %360 = vmatprep.subr.mxu0 0.0
    %361 = vmatpush1.msra.mxu0 0.0
    %362 = vmatprep.subr.mxu0 0.0
    %363 = vmatpush1.msra.mxu0 0.0
    %364 = vmatprep.subr.mxu0 0.0
    %365 = vmatpush1.msra.mxu0 0.0
    %366 = vmatprep.subr.mxu0 0.0
    %367 = vmatpush1.msra.mxu0 0.0
    %368 = vmatprep.subr.mxu0 0.0
    %369 = vmatpush1.msra.mxu0 0.0
    %370 = vmatprep.subr.mxu0 0.0
    %371 = vmatpush1.msra.mxu0 0.0
    %372 = vmatprep.subr.mxu0 0.0
    %373 = vmatpush1.msra.mxu0 0.0
    %374 = vmatprep.subr.mxu0 0.0
    %375 = vmatpush1.msra.mxu0 0.0
    %376 = vmatprep.subr.mxu0 0.0
    %377 = vmatpush1.msra.mxu0 0.0
    %378 = vmatprep.subr.mxu0 0.0
    %379 = vmatpush1.msra.mxu0 0.0
    %380 = vmatprep.subr.mxu0 0.0
    %381 = vmatpush1.msra.mxu0 0.0
    %382 = vmatprep.subr.mxu0 0.0
    %383 = vmatpush1.msra.mxu0 0.0
    %384 = vmatprep.mubr.f32.mxu0 0.0
    %385 = vmatmul.mubr.f32.gmra.mrb[0].mxu0 %v318
    %v386 = vpop.f32.mrb[0].mxu0
    %v387 = vadd.f32 0.0, %v386
    %v388 = vpop.f32.mrb[0].mxu0
    %389 = vdwg.mxu0
    %v390 = vadd.f32 %v316, %v387
    %v391 = vtanh.pop %v390
    %s392 = scalar_lea.vmem [#allocation12], 8
    %393 = vst.msk [vmem:[%s392] sm:$0xff] %vm225, %v391
    %v394 = vld [vmem:[#allocation2 + $0x10] sm:$0xff]
    %v396 = vsel %vm225, %v391, 0
    %398 = vmatprep.subr.mxu0 0.0
    %399 = vmatpush1.msra.mxu0 %v234
    %400 = vmatprep.subr.mxu0 0.0
    %401 = vmatpush1.msra.mxu0 %v235
    %402 = vmatprep.subr.mxu0 0.0
    %403 = vmatpush1.msra.mxu0 %v236
    %404 = vmatprep.subr.mxu0 0.0
    %405 = vmatpush1.msra.mxu0 %v237
    %406 = vmatprep.subr.mxu0 0.0
    %407 = vmatpush1.msra.mxu0 0.0
    %408 = vmatprep.subr.mxu0 0.0
    %409 = vmatpush1.msra.mxu0 0.0
    %410 = vmatprep.subr.mxu0 0.0
    %411 = vmatpush1.msra.mxu0 0.0
    %412 = vmatprep.subr.mxu0 0.0
    %413 = vmatpush1.msra.mxu0 0.0
    %414 = vmatprep.subr.mxu0 0.0
    %415 = vmatpush1.msra.mxu0 0.0
    %416 = vmatprep.subr.mxu0 0.0
    %417 = vmatpush1.msra.mxu0 0.0
    %418 = vmatprep.subr.mxu0 0.0
    %419 = vmatpush1.msra.mxu0 0.0
    %420 = vmatprep.subr.mxu0 0.0
    %421 = vmatpush1.msra.mxu0 0.0
    %422 = vmatprep.subr.mxu0 0.0
    %423 = vmatpush1.msra.mxu0 0.0
    %424 = vmatprep.subr.mxu0 0.0
    %425 = vmatpush1.msra.mxu0 0.0
    %426 = vmatprep.subr.mxu0 0.0
    %427 = vmatpush1.msra.mxu0 0.0
    %428 = vmatprep.subr.mxu0 0.0
    %429 = vmatpush1.msra.mxu0 0.0
    %430 = vmatprep.subr.mxu0 0.0
    %431 = vmatpush1.msra.mxu0 0.0
    %432 = vmatprep.subr.mxu0 0.0
    %433 = vmatpush1.msra.mxu0 0.0
    %434 = vmatprep.subr.mxu0 0.0
    %435 = vmatpush1.msra.mxu0 0.0
    %436 = vmatprep.subr.mxu0 0.0
    %437 = vmatpush1.msra.mxu0 0.0
    %438 = vmatprep.subr.mxu0 0.0
    %439 = vmatpush1.msra.mxu0 0.0
    %440 = vmatprep.subr.mxu0 0.0
    %441 = vmatpush1.msra.mxu0 0.0
    %442 = vmatprep.subr.mxu0 0.0
    %443 = vmatpush1.msra.mxu0 0.0
    %444 = vmatprep.subr.mxu0 0.0
    %445 = vmatpush1.msra.mxu0 0.0
    %446 = vmatprep.subr.mxu0 0.0
    %447 = vmatpush1.msra.mxu0 0.0
    %448 = vmatprep.subr.mxu0 0.0
    %449 = vmatpush1.msra.mxu0 0.0
    %450 = vmatprep.subr.mxu0 0.0
    %451 = vmatpush1.msra.mxu0 0.0
    %452 = vmatprep.subr.mxu0 0.0
    %453 = vmatpush1.msra.mxu0 0.0
    %454 = vmatprep.subr.mxu0 0.0
    %455 = vmatpush1.msra.mxu0 0.0
    %456 = vmatprep.subr.mxu0 0.0
    %457 = vmatpush1.msra.mxu0 0.0
    %458 = vmatprep.subr.mxu0 0.0
    %459 = vmatpush1.msra.mxu0 0.0
    %460 = vmatprep.subr.mxu0 0.0
    %461 = vmatpush1.msra.mxu0 0.0
    %462 = vmatprep.mubr.f32.mxu0 0.0
    %463 = vmatmul.mubr.f32.gmra.mrb[0].mxu0 %v396
    %v464 = vpop.f32.mrb[0].mxu0
    %v465 = vadd.f32 0.0, %v464
    %v466 = vpop.f32.mrb[0].mxu0
    %467 = vdwg.mxu0
    %v468 = vadd.f32 %v394, %v465
    %v469 = vtanh.pop %v468
    %s470 = scalar_lea.vmem [#allocation12], 16
    %471 = vst.msk [vmem:[%s470] sm:$0xff] %vm225, %v469
    %v472 = vld [vmem:[#allocation2 + $0x18] sm:$0xff]
    %v474 = vsel %vm225, %v469, 0
    %476 = vmatprep.subr.mxu0 0.0
    %477 = vmatpush1.msra.mxu0 %v234
    %478 = vmatprep.subr.mxu0 0.0
    %479 = vmatpush1.msra.mxu0 %v235
    %480 = vmatprep.subr.mxu0 0.0
    %481 = vmatpush1.msra.mxu0 %v236
    %482 = vmatprep.subr.mxu0 0.0
    %483 = vmatpush1.msra.mxu0 %v237
    %484 = vmatprep.subr.mxu0 0.0
    %485 = vmatpush1.msra.mxu0 0.0
    %486 = vmatprep.subr.mxu0 0.0
    %487 = vmatpush1.msra.mxu0 0.0
    %488 = vmatprep.subr.mxu0 0.0
    %489 = vmatpush1.msra.mxu0 0.0
    %490 = vmatprep.subr.mxu0 0.0
    %491 = vmatpush1.msra.mxu0 0.0
    %492 = vmatprep.subr.mxu0 0.0
    %493 = vmatpush1.msra.mxu0 0.0
    %494 = vmatprep.subr.mxu0 0.0
    %495 = vmatpush1.msra.mxu0 0.0
    %496 = vmatprep.subr.mxu0 0.0
    %497 = vmatpush1.msra.mxu0 0.0
    %498 = vmatprep.subr.mxu0 0.0
    %499 = vmatpush1.msra.mxu0 0.0
    %500 = vmatprep.subr.mxu0 0.0
    %501 = vmatpush1.msra.mxu0 0.0
    %502 = vmatprep.subr.mxu0 0.0
    %503 = vmatpush1.msra.mxu0 0.0
    %504 = vmatprep.subr.mxu0 0.0
    %505 = vmatpush1.msra.mxu0 0.0
    %506 = vmatprep.subr.mxu0 0.0
    %507 = vmatpush1.msra.mxu0 0.0
    %508 = vmatprep.subr.mxu0 0.0
    %509 = vmatpush1.msra.mxu0 0.0
    %510 = vmatprep.subr.mxu0 0.0
    %511 = vmatpush1.msra.mxu0 0.0
    %512 = vmatprep.subr.mxu0 0.0
    %513 = vmatpush1.msra.mxu0 0.0
    %514 = vmatprep.subr.mxu0 0.0
    %515 = vmatpush1.msra.mxu0 0.0
    %516 = vmatprep.subr.mxu0 0.0
    %517 = vmatpush1.msra.mxu0 0.0
    %518 = vmatprep.subr.mxu0 0.0
    %519 = vmatpush1.msra.mxu0 0.0
    %520 = vmatprep.subr.mxu0 0.0
    %521 = vmatpush1.msra.mxu0 0.0
    %522 = vmatprep.subr.mxu0 0.0
    %523 = vmatpush1.msra.mxu0 0.0
    %524 = vmatprep.subr.mxu0 0.0
    %525 = vmatpush1.msra.mxu0 0.0
    %526 = vmatprep.subr.mxu0 0.0
    %527 = vmatpush1.msra.mxu0 0.0
    %528 = vmatprep.subr.mxu0 0.0
    %529 = vmatpush1.msra.mxu0 0.0
    %530 = vmatprep.subr.mxu0 0.0
    %531 = vmatpush1.msra.mxu0 0.0
    %532 = vmatprep.subr.mxu0 0.0
    %533 = vmatpush1.msra.mxu0 0.0
    %534 = vmatprep.subr.mxu0 0.0
    %535 = vmatpush1.msra.mxu0 0.0
    %536 = vmatprep.subr.mxu0 0.0
    %537 = vmatpush1.msra.mxu0 0.0
    %538 = vmatprep.subr.mxu0 0.0
    %539 = vmatpush1.msra.mxu0 0.0
    %540 = vmatprep.mubr.f32.mxu0 0.0
    %541 = vmatmul.mubr.f32.gmra.mrb[0].mxu0 %v474
    %v542 = vpop.f32.mrb[0].mxu0
    %v543 = vadd.f32 0.0, %v542
    %v544 = vpop.f32.mrb[0].mxu0
    %545 = vdwg.mxu0
    %v546 = vadd.f32 %v472, %v543
    %v547 = vtanh.pop %v546
    %s548 = scalar_lea.vmem [#allocation12], 24
    %549 = vst.msk [vmem:[%s548] sm:$0xff] %vm225, %v547
    %v550 = vld [vmem:[#allocation2 + $0x20] sm:$0xff]
    %v552 = vsel %vm225, %v547, 0
    %554 = vmatprep.subr.mxu0 0.0
    %555 = vmatpush1.msra.mxu0 %v234
    %556 = vmatprep.subr.mxu0 0.0
    %557 = vmatpush1.msra.mxu0 %v235
    %558 = vmatprep.subr.mxu0 0.0
    %559 = vmatpush1.msra.mxu0 %v236
    %560 = vmatprep.subr.mxu0 0.0
    %561 = vmatpush1.msra.mxu0 %v237
    %562 = vmatprep.subr.mxu0 0.0
    %563 = vmatpush1.msra.mxu0 0.0
    %564 = vmatprep.subr.mxu0 0.0
    %565 = vmatpush1.msra.mxu0 0.0
    %566 = vmatprep.subr.mxu0 0.0
    %567 = vmatpush1.msra.mxu0 0.0
    %568 = vmatprep.subr.mxu0 0.0
    %569 = vmatpush1.msra.mxu0 0.0
    %570 = vmatprep.subr.mxu0 0.0
    %571 = vmatpush1.msra.mxu0 0.0
    %572 = vmatprep.subr.mxu0 0.0
    %573 = vmatpush1.msra.mxu0 0.0
    %574 = vmatprep.subr.mxu0 0.0
    %575 = vmatpush1.msra.mxu0 0.0
    %576 = vmatprep.subr.mxu0 0.0
    %577 = vmatpush1.msra.mxu0 0.0
    %578 = vmatprep.subr.mxu0 0.0
    %579 = vmatpush1.msra.mxu0 0.0
    %580 = vmatprep.subr.mxu0 0.0
    %581 = vmatpush1.msra.mxu0 0.0
    %582 = vmatprep.subr.mxu0 0.0
    %583 = vmatpush1.msra.mxu0 0.0
    %584 = vmatprep.subr.mxu0 0.0
    %585 = vmatpush1.msra.mxu0 0.0
    %586 = vmatprep.subr.mxu0 0.0
    %587 = vmatpush1.msra.mxu0 0.0
    %588 = vmatprep.subr.mxu0 0.0
    %589 = vmatpush1.msra.mxu0 0.0
    %590 = vmatprep.subr.mxu0 0.0
    %591 = vmatpush1.msra.mxu0 0.0
    %592 = vmatprep.subr.mxu0 0.0
    %593 = vmatpush1.msra.mxu0 0.0
    %594 = vmatprep.subr.mxu0 0.0
    %595 = vmatpush1.msra.mxu0 0.0
    %596 = vmatprep.subr.mxu0 0.0
    %597 = vmatpush1.msra.mxu0 0.0
    %598 = vmatprep.subr.mxu0 0.0
    %599 = vmatpush1.msra.mxu0 0.0
    %600 = vmatprep.subr.mxu0 0.0
    %601 = vmatpush1.msra.mxu0 0.0
    %602 = vmatprep.subr.mxu0 0.0
    %603 = vmatpush1.msra.mxu0 0.0
    %604 = vmatprep.subr.mxu0 0.0
    %605 = vmatpush1.msra.mxu0 0.0
    %606 = vmatprep.subr.mxu0 0.0
    %607 = vmatpush1.msra.mxu0 0.0
    %608 = vmatprep.subr.mxu0 0.0
    %609 = vmatpush1.msra.mxu0 0.0
    %610 = vmatprep.subr.mxu0 0.0
    %611 = vmatpush1.msra.mxu0 0.0
    %612 = vmatprep.subr.mxu0 0.0
    %613 = vmatpush1.msra.mxu0 0.0
    %614 = vmatprep.subr.mxu0 0.0
    %615 = vmatpush1.msra.mxu0 0.0
    %616 = vmatprep.subr.mxu0 0.0
    %617 = vmatpush1.msra.mxu0 0.0
    %618 = vmatprep.mubr.f32.mxu0 0.0
    %619 = vmatmul.mubr.f32.gmra.mrb[0].mxu0 %v552
    %v620 = vpop.f32.mrb[0].mxu0
    %v621 = vadd.f32 0.0, %v620
    %v622 = vpop.f32.mrb[0].mxu0
    %623 = vdwg.mxu0
    %v624 = vadd.f32 %v550, %v621
    %v625 = vtanh.pop %v624
    %s626 = scalar_lea.vmem [#allocation12], 32
    %627 = vst.msk [vmem:[%s626] sm:$0xff] %vm225, %v625
    %v628 = vld [vmem:[#allocation2 + $0x28] sm:$0xff]
    %v630 = vsel %vm225, %v625, 0
    %632 = vmatprep.subr.mxu0 0.0
    %633 = vmatpush1.msra.mxu0 %v234
    %634 = vmatprep.subr.mxu0 0.0
    %635 = vmatpush1.msra.mxu0 %v235
    %636 = vmatprep.subr.mxu0 0.0
    %637 = vmatpush1.msra.mxu0 %v236
    %638 = vmatprep.subr.mxu0 0.0
    %639 = vmatpush1.msra.mxu0 %v237
    %640 = vmatprep.subr.mxu0 0.0
    %641 = vmatpush1.msra.mxu0 0.0
    %642 = vmatprep.subr.mxu0 0.0
    %643 = vmatpush1.msra.mxu0 0.0
    %644 = vmatprep.subr.mxu0 0.0
    %645 = vmatpush1.msra.mxu0 0.0
    %646 = vmatprep.subr.mxu0 0.0
    %647 = vmatpush1.msra.mxu0 0.0
    %648 = vmatprep.subr.mxu0 0.0
    %649 = vmatpush1.msra.mxu0 0.0
    %650 = vmatprep.subr.mxu0 0.0
    %651 = vmatpush1.msra.mxu0 0.0
    %652 = vmatprep.subr.mxu0 0.0
    %653 = vmatpush1.msra.mxu0 0.0
    %654 = vmatprep.subr.mxu0 0.0
    %655 = vmatpush1.msra.mxu0 0.0
    %656 = vmatprep.subr.mxu0 0.0
    %657 = vmatpush1.msra.mxu0 0.0
    %658 = vmatprep.subr.mxu0 0.0
    %659 = vmatpush1.msra.mxu0 0.0
    %660 = vmatprep.subr.mxu0 0.0
    %661 = vmatpush1.msra.mxu0 0.0
    %662 = vmatprep.subr.mxu0 0.0
    %663 = vmatpush1.msra.mxu0 0.0
    %664 = vmatprep.subr.mxu0 0.0
    %665 = vmatpush1.msra.mxu0 0.0
    %666 = vmatprep.subr.mxu0 0.0
    %667 = vmatpush1.msra.mxu0 0.0
    %668 = vmatprep.subr.mxu0 0.0
    %669 = vmatpush1.msra.mxu0 0.0
    %670 = vmatprep.subr.mxu0 0.0
    %671 = vmatpush1.msra.mxu0 0.0
    %672 = vmatprep.subr.mxu0 0.0
    %673 = vmatpush1.msra.mxu0 0.0
    %674 = vmatprep.subr.mxu0 0.0
    %675 = vmatpush1.msra.mxu0 0.0
    %676 = vmatprep.subr.mxu0 0.0
    %677 = vmatpush1.msra.mxu0 0.0
    %678 = vmatprep.subr.mxu0 0.0
    %679 = vmatpush1.msra.mxu0 0.0
    %680 = vmatprep.subr.mxu0 0.0
    %681 = vmatpush1.msra.mxu0 0.0
    %682 = vmatprep.subr.mxu0 0.0
    %683 = vmatpush1.msra.mxu0 0.0
    %684 = vmatprep.subr.mxu0 0.0
    %685 = vmatpush1.msra.mxu0 0.0
    %686 = vmatprep.subr.mxu0 0.0
    %687 = vmatpush1.msra.mxu0 0.0
    %688 = vmatprep.subr.mxu0 0.0
    %689 = vmatpush1.msra.mxu0 0.0
    %690 = vmatprep.subr.mxu0 0.0
    %691 = vmatpush1.msra.mxu0 0.0
    %692 = vmatprep.subr.mxu0 0.0
    %693 = vmatpush1.msra.mxu0 0.0
    %694 = vmatprep.subr.mxu0 0.0
    %695 = vmatpush1.msra.mxu0 0.0
    %696 = vmatprep.mubr.f32.mxu0 0.0
    %697 = vmatmul.mubr.f32.gmra.mrb[0].mxu0 %v630
    %v698 = vpop.f32.mrb[0].mxu0
    %v699 = vadd.f32 0.0, %v698
    %v700 = vpop.f32.mrb[0].mxu0
    %701 = vdwg.mxu0
    %v702 = vadd.f32 %v628, %v699
    %v703 = vtanh.pop %v702
    %s704 = scalar_lea.vmem [#allocation12], 40
    %705 = vst.msk [vmem:[%s704] sm:$0xff] %vm225, %v703
    %v706 = vld [vmem:[#allocation2 + $0x30] sm:$0xff]
    %v708 = vsel %vm225, %v703, 0
    %710 = vmatprep.subr.mxu0 0.0
    %711 = vmatpush1.msra.mxu0 %v234
    %712 = vmatprep.subr.mxu0 0.0
    %713 = vmatpush1.msra.mxu0 %v235
    %714 = vmatprep.subr.mxu0 0.0
    %715 = vmatpush1.msra.mxu0 %v236
    %716 = vmatprep.subr.mxu0 0.0
    %717 = vmatpush1.msra.mxu0 %v237
    %718 = vmatprep.subr.mxu0 0.0
    %719 = vmatpush1.msra.mxu0 0.0
    %720 = vmatprep.subr.mxu0 0.0
    %721 = vmatpush1.msra.mxu0 0.0
    %722 = vmatprep.subr.mxu0 0.0
    %723 = vmatpush1.msra.mxu0 0.0
    %724 = vmatprep.subr.mxu0 0.0
    %725 = vmatpush1.msra.mxu0 0.0
    %726 = vmatprep.subr.mxu0 0.0
    %727 = vmatpush1.msra.mxu0 0.0
    %728 = vmatprep.subr.mxu0 0.0
    %729 = vmatpush1.msra.mxu0 0.0
    %730 = vmatprep.subr.mxu0 0.0
    %731 = vmatpush1.msra.mxu0 0.0
    %732 = vmatprep.subr.mxu0 0.0
    %733 = vmatpush1.msra.mxu0 0.0
    %734 = vmatprep.subr.mxu0 0.0
    %735 = vmatpush1.msra.mxu0 0.0
    %736 = vmatprep.subr.mxu0 0.0
    %737 = vmatpush1.msra.mxu0 0.0
    %738 = vmatprep.subr.mxu0 0.0
    %739 = vmatpush1.msra.mxu0 0.0
    %740 = vmatprep.subr.mxu0 0.0
    %741 = vmatpush1.msra.mxu0 0.0
    %742 = vmatprep.subr.mxu0 0.0
    %743 = vmatpush1.msra.mxu0 0.0
    %744 = vmatprep.subr.mxu0 0.0
    %745 = vmatpush1.msra.mxu0 0.0
    %746 = vmatprep.subr.mxu0 0.0
    %747 = vmatpush1.msra.mxu0 0.0
    %748 = vmatprep.subr.mxu0 0.0
    %749 = vmatpush1.msra.mxu0 0.0
    %750 = vmatprep.subr.mxu0 0.0
    %751 = vmatpush1.msra.mxu0 0.0
    %752 = vmatprep.subr.mxu0 0.0
    %753 = vmatpush1.msra.mxu0 0.0
    %754 = vmatprep.subr.mxu0 0.0
    %755 = vmatpush1.msra.mxu0 0.0
    %756 = vmatprep.subr.mxu0 0.0
    %757 = vmatpush1.msra.mxu0 0.0
    %758 = vmatprep.subr.mxu0 0.0
    %759 = vmatpush1.msra.mxu0 0.0
    %760 = vmatprep.subr.mxu0 0.0
    %761 = vmatpush1.msra.mxu0 0.0
    %762 = vmatprep.subr.mxu0 0.0
    %763 = vmatpush1.msra.mxu0 0.0
    %764 = vmatprep.subr.mxu0 0.0
    %765 = vmatpush1.msra.mxu0 0.0
    %766 = vmatprep.subr.mxu0 0.0
    %767 = vmatpush1.msra.mxu0 0.0
    %768 = vmatprep.subr.mxu0 0.0
    %769 = vmatpush1.msra.mxu0 0.0
    %770 = vmatprep.subr.mxu0 0.0
    %771 = vmatpush1.msra.mxu0 0.0
    %772 = vmatprep.subr.mxu0 0.0
    %773 = vmatpush1.msra.mxu0 0.0
    %774 = vmatprep.mubr.f32.mxu0 0.0
    %775 = vmatmul.mubr.f32.gmra.mrb[0].mxu0 %v708
    %v776 = vpop.f32.mrb[0].mxu0
    %v777 = vadd.f32 0.0, %v776
    %v778 = vpop.f32.mrb[0].mxu0
    %779 = vdwg.mxu0
    %v780 = vadd.f32 %v706, %v777
    %v781 = vtanh.pop %v780
    %s782 = scalar_lea.vmem [#allocation12], 48
    %783 = vst.msk [vmem:[%s782] sm:$0xff] %vm225, %v781
    %v784 = vld [vmem:[#allocation2 + $0x38] sm:$0xff]
    %v786 = vsel %vm225, %v781, 0
    %788 = vmatprep.subr.mxu0 0.0
    %789 = vmatpush1.msra.mxu0 %v234
    %790 = vmatprep.subr.mxu0 0.0
    %791 = vmatpush1.msra.mxu0 %v235
    %792 = vmatprep.subr.mxu0 0.0
    %793 = vmatpush1.msra.mxu0 %v236
    %794 = vmatprep.subr.mxu0 0.0
    %795 = vmatpush1.msra.mxu0 %v237
    %796 = vmatprep.subr.mxu0 0.0
    %797 = vmatpush1.msra.mxu0 0.0
    %798 = vmatprep.subr.mxu0 0.0
    %799 = vmatpush1.msra.mxu0 0.0
    %800 = vmatprep.subr.mxu0 0.0
    %801 = vmatpush1.msra.mxu0 0.0
    %802 = vmatprep.subr.mxu0 0.0
    %803 = vmatpush1.msra.mxu0 0.0
    %804 = vmatprep.subr.mxu0 0.0
    %805 = vmatpush1.msra.mxu0 0.0
    %806 = vmatprep.subr.mxu0 0.0
    %807 = vmatpush1.msra.mxu0 0.0
    %808 = vmatprep.subr.mxu0 0.0
    %809 = vmatpush1.msra.mxu0 0.0
    %810 = vmatprep.subr.mxu0 0.0
    %811 = vmatpush1.msra.mxu0 0.0
    %812 = vmatprep.subr.mxu0 0.0
    %813 = vmatpush1.msra.mxu0 0.0
    %814 = vmatprep.subr.mxu0 0.0
    %815 = vmatpush1.msra.mxu0 0.0
    %816 = vmatprep.subr.mxu0 0.0
    %817 = vmatpush1.msra.mxu0 0.0
    %818 = vmatprep.subr.mxu0 0.0
    %819 = vmatpush1.msra.mxu0 0.0
    %820 = vmatprep.subr.mxu0 0.0
    %821 = vmatpush1.msra.mxu0 0.0
    %822 = vmatprep.subr.mxu0 0.0
    %823 = vmatpush1.msra.mxu0 0.0
    %824 = vmatprep.subr.mxu0 0.0
    %825 = vmatpush1.msra.mxu0 0.0
    %826 = vmatprep.subr.mxu0 0.0
    %827 = vmatpush1.msra.mxu0 0.0
    %828 = vmatprep.subr.mxu0 0.0
    %829 = vmatpush1.msra.mxu0 0.0
    %830 = vmatprep.subr.mxu0 0.0
    %831 = vmatpush1.msra.mxu0 0.0
    %832 = vmatprep.subr.mxu0 0.0
    %833 = vmatpush1.msra.mxu0 0.0
    %834 = vmatprep.subr.mxu0 0.0
    %835 = vmatpush1.msra.mxu0 0.0
    %836 = vmatprep.subr.mxu0 0.0
    %837 = vmatpush1.msra.mxu0 0.0
    %838 = vmatprep.subr.mxu0 0.0
    %839 = vmatpush1.msra.mxu0 0.0
    %840 = vmatprep.subr.mxu0 0.0
    %841 = vmatpush1.msra.mxu0 0.0
    %842 = vmatprep.subr.mxu0 0.0
    %843 = vmatpush1.msra.mxu0 0.0
    %844 = vmatprep.subr.mxu0 0.0
    %845 = vmatpush1.msra.mxu0 0.0
    %846 = vmatprep.subr.mxu0 0.0
    %847 = vmatpush1.msra.mxu0 0.0
    %848 = vmatprep.subr.mxu0 0.0
    %849 = vmatpush1.msra.mxu0 0.0
    %850 = vmatprep.subr.mxu0 0.0
    %851 = vmatpush1.msra.mxu0 0.0
    %852 = vmatprep.mubr.f32.mxu0 0.0
    %853 = vmatmul.mubr.f32.gmra.mrb[0].mxu0 %v786
    %v854 = vpop.f32.mrb[0].mxu0
    %v855 = vadd.f32 0.0, %v854
    %v856 = vpop.f32.mrb[0].mxu0
    %857 = vdwg.mxu0
    %v858 = vadd.f32 %v784, %v855
    %v859 = vtanh.pop %v858
    %s860 = scalar_lea.vmem [#allocation12], 56
    %861 = vst.msk [vmem:[%s860] sm:$0xff] %vm225, %v859
    %862 = vst.msk [vmem:[#allocation3] sm:$0xff] %vm225, %v859
    // Predicated region
    $region38: #{tpu_custom_call.1} parent=1 // pred_check
      _
    $region39: #{tpu_custom_call.1} parent=1 // pred_check_branch
      %864 = sbr.rel (0) target = $region41
    $region40: #{tpu_custom_call.1} parent=1 // pred_region
      %s866 = ssub.s32 1024, 1024
      %867 = vsyncadd [#allocation6], %s866
      %s868 = sshll.u32 [#allocation12], 4
      %s869 = int_to_ptr.vmem [resolvable:$true] %s868
      %874 = dma.vmem_to_hbm [thread:$0]  %s869, 1024, %s4, [#allocation6], 128, 128, 8
    $region41: #{tpu_custom_call.1} parent=1 // pred_fallthru
      _
    // Predicated region
    $region42: #{tpu_custom_call.1} parent=1 // pred_check
      _
    $region43: #{tpu_custom_call.1} parent=1 // pred_check_branch
      %876 = sbr.rel (0) target = $region45
    $region44: #{tpu_custom_call.1} parent=1 // pred_region
      %877 = dma.done [#allocation6], 1024
    $region45: #{tpu_custom_call.1} parent=1 // pred_fallthru
      _
    %878 = vsyncpa [#allocation5], 1
    %879 = vsyncpa [#allocation8], 1
    %880 = vsyncpa [#allocation11], 1
    %881 = vsyncpa [#allocation6], 1

</llo_original>
